<compile_context>
chip_gen: v6e
topology: v6e:2x2x1
jax: 0.10.0
libtpu: 0.0.40
codegen_flags: <defaults>
</compile_context>

<pallas_src>
import functools
import math

import jax
import jax.numpy as jnp
import numpy as np
from jax import lax
from jax.experimental import pallas as pl
from jax.experimental.pallas import tpu as pltpu


# ---------------------------------------------------------------------------
# Buffer setup (plain JAX glue) -- matches torch __init__ exactly.
# ---------------------------------------------------------------------------
def make_positional_table(max_len: int, d_model: int,
                          dtype=jnp.float32) -> jnp.ndarray:
    """Returns pe of shape (max_len, 1, d_model)."""
    position = jnp.arange(max_len, dtype=jnp.float32)[:, None]            # (L, 1)
    div_term = jnp.exp(
        jnp.arange(0, d_model, 2, dtype=jnp.float32) * (-math.log(10000.0) / d_model)
    )                                                                      # (D/2,)
    pe = jnp.zeros((max_len, d_model), dtype=jnp.float32)
    pe = pe.at[:, 0::2].set(jnp.sin(position * div_term))
    pe = pe.at[:, 1::2].set(jnp.cos(position * div_term))
    return pe[:, None, :].astype(dtype)                                    # (L, 1, D)


# ---------------------------------------------------------------------------
# Kernels (lane-dense 2D tiles: x/out (TS, B*D), pe (TS, D))
# ---------------------------------------------------------------------------
def _broadcast_pe(pe_tile, batch: int):
    # Replicate pe across the batch inside the kernel: (TS, D) -> (TS, B*D).
    # Lane index b*D + d of the flattened (B, D) dims must hold pe[:, d],
    # i.e. B concatenated copies along the lane axis.
    if batch == 1:
        return pe_tile
    return jnp.concatenate([pe_tile] * batch, axis=-1)


def _pe_add_kernel(x_ref, pe_ref, o_ref, *, batch: int):
    o_ref[...] = x_ref[...] + _broadcast_pe(pe_ref[...], batch)


def _pe_add_dropout_kernel(seed_ref, x_ref, pe_ref, o_ref, *,
                           batch: int, p: float):
    y = x_ref[...] + _broadcast_pe(pe_ref[...], batch)
    shape = y.shape

    # --- Counter-based per-element random bits (plain jnp ops only) --------
    # Per-block decorrelated seed (golden-ratio mix of the user seed + pid).
    pid = pl.program_id(0).astype(jnp.uint32)
    seed = seed_ref[0].astype(jnp.uint32) + pid * jnp.uint32(0x9E3779B9)

    rows = lax.broadcasted_iota(jnp.uint32, shape, 0)
    cols = lax.broadcasted_iota(jnp.uint32, shape, 1)
    h = (rows * jnp.uint32(shape[1]) + cols) ^ seed
    # murmur3 fmix32 finalizer (wrapping uint32 arithmetic).
    h = h ^ (h >> 16)
    h = h * jnp.uint32(0x85EBCA6B)
    h = h ^ (h >> 13)
    h = h * jnp.uint32(0xC2B2AE35)
    h = h ^ (h >> 16)

    # Top 31 bits as a non-negative int32 uniform in [0, 2^31); keep with
    # probability (1 - p) via a single integer compare (quantization <= 2^-31).
    rnd = (h >> jnp.uint32(1)).astype(jnp.int32)
    thresh = jnp.int32(min(int(round(p * (1 << 31))), (1 << 31) - 1))
    scale = jnp.asarray(1.0 / (1.0 - p), dtype=y.dtype)
    o_ref[...] = jnp.where(rnd >= thresh, y * scale, jnp.zeros_like(y))


# ---------------------------------------------------------------------------
# Wrapper
# ---------------------------------------------------------------------------
def _choose_ts(seq_len: int, row_bytes: int,
               target_block_bytes: int = 4 << 20) -> int:
    """Rows per grid step: ~4 MiB blocks, sublane-aligned, >=2 steps if possible."""
    ts = max(1, target_block_bytes // max(row_bytes, 1))
    if seq_len >= 16:
        ts = min(ts, -(-seq_len // 2))   # keep >=2 grid steps (v7x megacore)
    ts = min(ts, seq_len)
    if ts >= 8:
        ts = (ts // 8) * 8               # sublane alignment for partial grids
    return ts


def positional_encoder(x: jnp.ndarray,
                       pe: jnp.ndarray,
                       *,
                       p: float = 0.1,
                       training: bool = False,
                       seed: int = 0) -> jnp.ndarray:
    """x: (S, B, D), pe: (max_len, 1, D). Returns (S, B, D)."""
    S, B, D = x.shape
    assert pe.shape[0] >= S and pe.shape[-1] == D

    dtype = x.dtype
    x2d = x.reshape(S, B * D)                               # free reshape (row-major)
    pe2d = pe.reshape(pe.shape[0], D)[:S].astype(dtype)     # (S, D), compute dtype

    ts = _choose_ts(S, B * D * x2d.dtype.itemsize)
    grid = (-(-S // ts),)

    cp = pltpu.CompilerParams(
        dimension_semantics=("parallel",),
        vmem_limit_bytes=32 * 1024 * 1024,
    )

    if (not training) or p <= 0.0:
        kernel = functools.partial(_pe_add_kernel, batch=B)
        out2d = pl.pallas_call(
            kernel,
            out_shape=jax.ShapeDtypeStruct((S, B * D), dtype),
            grid_spec=pltpu.PrefetchScalarGridSpec(
                num_scalar_prefetch=0,
                grid=grid,
                in_specs=[
                    pl.BlockSpec((ts, B * D), lambda i: (i, 0)),   # x rows
                    pl.BlockSpec((ts, D), lambda i: (i, 0)),       # pe rows
                ],
                out_specs=pl.BlockSpec((ts, B * D), lambda i: (i, 0)),
            ),
            compiler_params=cp,
        )(x2d, pe2d)
    else:
        kernel = functools.partial(_pe_add_dropout_kernel, batch=B, p=float(p))
        seed_arr = jnp.array([seed], dtype=jnp.int32)
        out2d = pl.pallas_call(
            kernel,
            out_shape=jax.ShapeDtypeStruct((S, B * D), dtype),
            grid_spec=pltpu.PrefetchScalarGridSpec(
                num_scalar_prefetch=1,                      # seed -> SMEM
                grid=grid,
                in_specs=[
                    pl.BlockSpec((ts, B * D), lambda i, s: (i, 0)),
                    pl.BlockSpec((ts, D), lambda i, s: (i, 0)),
                ],
                out_specs=pl.BlockSpec((ts, B * D), lambda i, s: (i, 0)),
            ),
            compiler_params=cp,
        )(seed_arr, x2d, pe2d)

    return out2d.reshape(S, B, D)


if __name__ == "__main__":
    # Small deterministic example: seq=8, batch=4, d_model=32 (B*D = 128 -> lane-dense).
    S, B, D, MAX_LEN = 8, 4, 32, 1000
    key = jax.random.PRNGKey(0)
    x = jax.random.normal(key, (S, B, D), dtype=jnp.float32)

    pe = make_positional_table(MAX_LEN, D)
    ref = x + pe[:S]                       # plain-JAX semantics of torch forward (eval)

    # Eval-mode forward (dropout = identity), matching module.eval().
    out = jax.block_until_ready(positional_encoder(x, pe, p=0.1, training=False))
    assert out.shape == (S, B, D)
    assert jnp.allclose(out, ref, atol=1e-6, rtol=1e-6)

    # Train-mode forward: inverted dropout (kept values scaled by 1/(1-p), dropped = 0).
    p = 0.1
    out_tr = jax.block_until_ready(
        positional_encoder(x, pe, p=p, training=True, seed=1234))
    assert out_tr.shape == (S, B, D)
    out_np, ref_np = np.asarray(out_tr), np.asarray(ref)
    kept = out_np != 0.0
    assert np.allclose(out_np[kept], (ref_np / (1.0 - p))[kept], rtol=1e-5, atol=1e-5)
    drop_frac = 1.0 - kept.mean()
    assert 0.0 < drop_frac < 0.5, drop_frac

    print("KERNEL_OK")
</pallas_src>

<mosaic_0001>
module attributes {stable_mosaic.version = 11 : i64} {
  func.func @_pe_add_kernel(%arg0: i32, %arg1: memref<8x128xf32, #tpu.memory_space<vmem>>, %arg2: memref<8x32xf32, #tpu.memory_space<vmem>>, %arg3: memref<8x128xf32, #tpu.memory_space<vmem>>) attributes {dimension_semantics = [#tpu.dimension_semantics<parallel>], iteration_bounds = array<i64: 1>, scalar_prefetch = 0 : i64, scratch_operands = 0 : i64, tpu.core_type = #tpu.core_type<tc>, window_params = [{transform_indices = @transform_0, window_bounds = array<i64: 8, 128>}, {transform_indices = @transform_1, window_bounds = array<i64: 8, 32>}, {transform_indices = @transform_2, window_bounds = array<i64: 8, 128>}]} {
    %c0 = arith.constant 0 : index
    %c0_0 = arith.constant 0 : index
    %0 = vector.load %arg1[%c0, %c0_0] : memref<8x128xf32, #tpu.memory_space<vmem>>, vector<8x128xf32>
    %c0_1 = arith.constant 0 : index
    %c0_2 = arith.constant 0 : index
    %1 = vector.load %arg2[%c0_1, %c0_2] : memref<8x32xf32, #tpu.memory_space<vmem>>, vector<8x32xf32>
    %2 = tpu.concatenate %1, %1, %1, %1 in 1 : vector<8x32xf32>, vector<8x32xf32>, vector<8x32xf32>, vector<8x32xf32> -> vector<8x128xf32>
    %3 = arith.addf %0, %2 : vector<8x128xf32>
    %c0_3 = arith.constant 0 : index
    %c0_4 = arith.constant 0 : index
    %4 = vector.load %arg3[%c0_3, %c0_4] : memref<8x128xf32, #tpu.memory_space<vmem>>, vector<8x128xf32>
    tpu.vector_store %arg3[%c0_3, %c0_4], %3 {strides = array<i32>} : memref<8x128xf32, #tpu.memory_space<vmem>>, vector<8x128xf32>,
    return
  }
  func.func @transform_0(%arg0: i32) -> (i32, i32) {
    %c0_i32 = arith.constant 0 : i32
    %c0_i32_0 = arith.constant 0 : i32
    return %arg0, %c0_i32 : i32, i32
  }
  func.func @transform_1(%arg0: i32) -> (i32, i32) {
    %c0_i32 = arith.constant 0 : i32
    %c0_i32_0 = arith.constant 0 : i32
    return %arg0, %c0_i32 : i32, i32
  }
  func.func @transform_2(%arg0: i32) -> (i32, i32) {
    %c0_i32 = arith.constant 0 : i32
    %c0_i32_0 = arith.constant 0 : i32
    return %arg0, %c0_i32 : i32, i32
  }
}

</mosaic_0001>

<llo_original>
// kernel: tpu_custom_call.1
$region0: #{tpu_custom_call.1}
  #allocation0 [shape = 'u32[]', space=smem, size = 0x4, offset = 0x4, fixed_abs, tag = 'smem constant byte address 0x4 - core index']
  #allocation1 [shape = 'u32[144,128]{1,0:T(1,128)}', space=vmem, size = 0x12000, scoped, tag = 'internal scratch']
  %s0 = inlined_call_operand.hbm [shape: f32[8,128], index: 0, kind: input, shape index: {}]
  %s1 = inlined_call_operand.hbm [shape: f32[8,32], index: 1, kind: input, shape index: {}]
  %s2 = inlined_call_operand.hbm [shape: f32[8,128], index: 2, kind: output, shape index: {}]
  %s3 = sld [smem:[#allocation0]]
  $region26: #{tpu_custom_call.1} parent=0
    _
  %s5 = ssub.s32 1, %s3
  %s6 = scalar_select 0, %s5, %s3
  $region1: #{tpu_custom_call.1} parent=0
    #allocation2 [shape = 'u8[4096]{0}', space=vmem, size = 0x1000, scoped, tag = 'input window, operand 0, single buffered']
    #allocation3 [shape = 's32[1]{0}', space=sflag, size = 0x4, scoped, tag = 'scoped memory for tpu_custom_call.1']
    #allocation4 [shape = 's32[1]{0}', space=sflag, size = 0x4, scoped, tag = 'scoped memory for tpu_custom_call.1']
    #allocation5 [shape = 'u8[4096]{0}', space=vmem, size = 0x1000, scoped, tag = 'input window, operand 1, single buffered']
    #allocation6 [shape = 's32[1]{0}', space=sflag, size = 0x4, scoped, tag = 'scoped memory for tpu_custom_call.1']
    #allocation7 [shape = 'u8[4096]{0}', space=vmem, size = 0x1000, scoped, tag = 'output window, operand 0, single buffered']
    %7 = vsyncpa [#allocation3], 0
    %8 = vsyncpa [#allocation6], 0
    %9 = vsyncpa [#allocation4], 0
    // Predicated region
    $region2: #{tpu_custom_call.1} parent=1 // pred_check
      _
    $region3: #{tpu_custom_call.1} parent=1 // pred_check_branch
      %11 = sbr.rel (0) target = $region5
    $region4: #{tpu_custom_call.1} parent=1 // pred_region
      %s13 = ssub.s32 128, 128
      %14 = vsyncadd [#allocation3], %s13
      %s16 = sshll.u32 [#allocation2], 4
      %s17 = int_to_ptr.vmem [resolvable:$true] %s16
      %19 = dma.hbm_to_vmem [thread:$0]  %s0, 128, %s17, [#allocation3]
    $region5: #{tpu_custom_call.1} parent=1 // pred_fallthru
      _
    // Predicated region
    $region6: #{tpu_custom_call.1} parent=1 // pred_check
      _
    $region7: #{tpu_custom_call.1} parent=1 // pred_check_branch
      %21 = sbr.rel (0) target = $region9
    $region8: #{tpu_custom_call.1} parent=1 // pred_region
      %s23 = ssub.s32 128, 128
      %24 = vsyncadd [#allocation6], %s23
      %s26 = sshll.u32 [#allocation5], 4
      %s27 = int_to_ptr.vmem [resolvable:$true] %s26
      %29 = dma.hbm_to_vmem [thread:$0]  %s1, 128, %s27, [#allocation6]
    $region9: #{tpu_custom_call.1} parent=1 // pred_fallthru
      _
    // Predicated region
    $region10: #{tpu_custom_call.1} parent=1 // pred_check
      _
    $region11: #{tpu_custom_call.1} parent=1 // pred_check_branch
      %31 = sbr.rel (0) target = $region13
    $region12: #{tpu_custom_call.1} parent=1 // pred_region
      %32 = dma.done [#allocation3], 128
    $region13: #{tpu_custom_call.1} parent=1 // pred_fallthru
      _
    // Predicated region
    $region14: #{tpu_custom_call.1} parent=1 // pred_check
      _
    $region15: #{tpu_custom_call.1} parent=1 // pred_check_branch
      %34 = sbr.rel (0) target = $region17
    $region16: #{tpu_custom_call.1} parent=1 // pred_region
      %35 = dma.done [#allocation6], 128
    $region17: #{tpu_custom_call.1} parent=1 // pred_fallthru
      _
    %v36 = vld [vmem:[#allocation2] sm:$0xff]
    %v37 = vld [vmem:[#allocation5] sm:$0xff]
    %39 = vrot.lane.b32.xlu0 %v37, 32
    %v40 = vpop.permute.xlu0 %39
    %42 = vrot.lane.b32.xlu0 %v37, 64
    %v43 = vpop.permute.xlu0 %42
    %45 = vrot.lane.b32.xlu0 %v37, 96
    %v46 = vpop.permute.xlu0 %45
    %vm48 = vcmask 261120
    %v49 = vsel %vm48, %v37, %v40
    %vm50 = vcmask 523264
    %v51 = vsel %vm50, %v49, %v43
    %vm52 = vcmask 785408
    %v53 = vsel %vm52, %v51, %v46
    %v54 = vadd.f32 %v36, %v53
    %55 = vst [vmem:[#allocation7] sm:$0xff] %v54
    // Predicated region
    $region18: #{tpu_custom_call.1} parent=1 // pred_check
      _
    $region19: #{tpu_custom_call.1} parent=1 // pred_check_branch
      %57 = sbr.rel (0) target = $region21
    $region20: #{tpu_custom_call.1} parent=1 // pred_region
      %s59 = ssub.s32 128, 128
      %60 = vsyncadd [#allocation4], %s59
      %s62 = sshll.u32 [#allocation7], 4
      %s63 = int_to_ptr.vmem [resolvable:$true] %s62
      %65 = dma.vmem_to_hbm [thread:$0]  %s63, 128, %s2, [#allocation4]
    $region21: #{tpu_custom_call.1} parent=1 // pred_fallthru
      _
    // Predicated region
    $region22: #{tpu_custom_call.1} parent=1 // pred_check
      _
    $region23: #{tpu_custom_call.1} parent=1 // pred_check_branch
      %67 = sbr.rel (0) target = $region25
    $region24: #{tpu_custom_call.1} parent=1 // pred_region
      %68 = dma.done [#allocation4], 128
    $region25: #{tpu_custom_call.1} parent=1 // pred_fallthru
      _
    %69 = vsyncpa [#allocation3], 1
    %70 = vsyncpa [#allocation6], 1
    %71 = vsyncpa [#allocation4], 1

</llo_original>
